<compile_context>
chip_gen: v7x
topology: tpu7x:2x2x1
jax: 0.10.0
libtpu: 0.0.40
codegen_flags: <defaults>
</compile_context>

<pallas_src>
import functools
import math

import jax
import jax.numpy as jnp
from jax.experimental import pallas as pl
from jax.experimental.pallas import tpu as pltpu


def _round_up(x, m):
    return ((x + m - 1) // m) * m


def _contiguous_runs(dims):
    """Group an index sequence into maximal runs of consecutive ascending
    ints, preserving order:  (1, 3, 4) -> [(1, 2), (3, 5)]."""
    runs = []
    for d in dims:
        if runs and d == runs[-1][1]:
            runs[-1] = (runs[-1][0], d + 1)
        else:
            runs.append((d, d + 1))
    return runs


def _cossin_kernel(xt_ref, ot_ref, *, q_ndim, angular_runs, non_angular_runs,
                   only_q):
    # Feature-major block: (d_in, C) — features on sublanes, rows on lanes.
    xt = xt_ref[...]
    q = xt[:q_ndim, :]                        # (q_ndim, C)

    parts = []
    if angular_runs:
        # Transcendentals over the minimal contiguous span that covers every
        # angular dim: every vreg touched is full-lane dense.
        a_lo = min(lo for lo, _ in angular_runs)
        a_hi = max(hi for _, hi in angular_runs)
        q_span = q[a_lo:a_hi, :]
        cos_span = jnp.cos(q_span)
        sin_span = jnp.sin(q_span)
        for lo, hi in angular_runs:           # cos(q[..., angular])
            parts.append(cos_span[lo - a_lo:hi - a_lo, :])
        for lo, hi in angular_runs:           # sin(q[..., angular])
            parts.append(sin_span[lo - a_lo:hi - a_lo, :])
    for lo, hi in non_angular_runs:           # passthrough q[..., non_angular]
        parts.append(q[lo:hi, :])
    if not only_q:                            # passthrough "other" half
        parts.append(xt[q_ndim:, :])

    out = parts[0] if len(parts) == 1 else jnp.concatenate(parts, axis=0)
    ot_ref[...] = out.astype(ot_ref.dtype)


def cossin_pallas(x, q_ndim, angular_dims, only_q=True, col_tile=16384,
                  out_dtype=None):
    """Pallas implementation of CosSin.forward.

    x: array of shape (..., q_ndim) if only_q else (..., 2*q_ndim).
    Returns array of shape (..., 2*len(angular) + len(non_angular) [+ q_ndim]).
    """
    angular_dims = tuple(angular_dims)
    non_angular_dims = tuple(sorted(set(range(q_ndim)) - set(angular_dims)))

    d_in = x.shape[-1]
    expected_in = q_ndim if only_q else 2 * q_ndim
    assert d_in == expected_in, (d_in, expected_in)

    d_out = 2 * len(angular_dims) + len(non_angular_dims)
    if not only_q:
        d_out += q_ndim

    out_dtype = x.dtype if out_dtype is None else jnp.dtype(out_dtype)

    lead_shape = x.shape[:-1]
    rows = math.prod(lead_shape) if lead_shape else 1

    # Lane-dense layout: rows on the 128-wide lane axis, features on sublanes.
    xt = jnp.swapaxes(x.reshape(rows, d_in), 0, 1)        # (d_in, rows)

    # ---- column-tile selection ------------------------------------------
    # Biggest tile that fits a conservative VMEM budget (double-buffered in
    # and out blocks, sublane-padded).  Budget leaves ample headroom under
    # the scoped-VMEM default on every generation (v7x: 64 MiB phys / 32 MiB).
    bytes_per_col = 2 * (jnp.dtype(x.dtype).itemsize * _round_up(d_in, 8)
                         + out_dtype.itemsize * _round_up(max(d_out, 1), 8))
    vmem_budget = 8 * 1024 * 1024
    vmem_cap = max(128, (vmem_budget // bytes_per_col) // 128 * 128)
    max_tile = max(128, min(_round_up(col_tile, 128), vmem_cap))

    if rows <= max_tile:
        # Single block; extent == full array dim so no 128-divisibility needed
        # and no ragged handling / zero padding anywhere.
        tile_c = rows
    else:
        tile_c = max_tile                      # 128-multiple, ragged last block

    grid = (pl.cdiv(rows, tile_c),)

    kernel = functools.partial(
        _cossin_kernel,
        q_ndim=q_ndim,
        angular_runs=_contiguous_runs(angular_dims),
        non_angular_runs=_contiguous_runs(non_angular_dims),
        only_q=only_q,
    )

    out_t = pl.pallas_call(
        kernel,
        out_shape=jax.ShapeDtypeStruct((d_out, rows), out_dtype),
        grid_spec=pltpu.PrefetchScalarGridSpec(
            num_scalar_prefetch=0,
            grid=grid,
            in_specs=[pl.BlockSpec((d_in, tile_c), lambda i: (0, i))],
            out_specs=pl.BlockSpec((d_out, tile_c), lambda i: (0, i)),
        ),
        compiler_params=pltpu.CompilerParams(
            dimension_semantics=("parallel",)),
    )(xt)

    return jnp.swapaxes(out_t, 0, 1).reshape(*lead_shape, d_out)


def cossin_reference(x, q_ndim, angular_dims, only_q=True):
    """Plain-JAX reference mirroring the PyTorch forward."""
    angular_dims = tuple(angular_dims)
    non_angular_dims = tuple(sorted(set(range(q_ndim)) - set(angular_dims)))
    if only_q:
        q, other = x, None
    else:
        q, other = jnp.split(x, 2, axis=-1)
    q_ang = q[..., list(angular_dims)]
    q_not = q[..., list(non_angular_dims)]
    parts = [jnp.cos(q_ang), jnp.sin(q_ang), q_not]
    if not only_q:
        parts.append(other)
    return jnp.concatenate(parts, axis=-1)


if __name__ == "__main__":
    key = jax.random.PRNGKey(0)

    q_ndim = 6
    angular_dims = (1, 3, 4)

    # Case 1: only_q=False, x = concat([q, other], -1) -> last dim 2*q_ndim
    batch, seq = 2, 8
    x_full = jax.random.normal(key, (batch, seq, 2 * q_ndim), dtype=jnp.float32)
    out_full = jax.block_until_ready(
        cossin_pallas(x_full, q_ndim, angular_dims, only_q=False))
    ref_full = cossin_reference(x_full, q_ndim, angular_dims, only_q=False)
    assert out_full.shape == ref_full.shape, (out_full.shape, ref_full.shape)
    assert jnp.allclose(out_full, ref_full, atol=1e-5, rtol=1e-5)

    # Case 2: only_q=True, x = q only
    k2 = jax.random.fold_in(key, 1)
    x_q = jax.random.normal(k2, (batch, seq, q_ndim), dtype=jnp.float32)
    out_q = jax.block_until_ready(
        cossin_pallas(x_q, q_ndim, angular_dims, only_q=True))
    ref_q = cossin_reference(x_q, q_ndim, angular_dims, only_q=True)
    assert out_q.shape == ref_q.shape, (out_q.shape, ref_q.shape)
    assert jnp.allclose(out_q, ref_q, atol=1e-5, rtol=1e-5)

    # Case 3a: moderate size -> single block (full-extent, no ragged handling).
    k3 = jax.random.fold_in(key, 2)
    x_big = jax.random.normal(k3, (7, 93, q_ndim), dtype=jnp.float32)
    out_big = jax.block_until_ready(
        cossin_pallas(x_big, q_ndim, angular_dims, only_q=True))
    ref_big = cossin_reference(x_big, q_ndim, angular_dims, only_q=True)
    assert out_big.shape == ref_big.shape, (out_big.shape, ref_big.shape)
    assert jnp.allclose(out_big, ref_big, atol=1e-5, rtol=1e-5)

    # Case 3b: force a multi-step grid with a ragged last block
    # (7*93 = 651 rows, 128-column tiles -> 6 steps, last step ragged).
    out_big_tiled = jax.block_until_ready(
        cossin_pallas(x_big, q_ndim, angular_dims, only_q=True, col_tile=128))
    assert jnp.allclose(out_big_tiled, ref_big, atol=1e-5, rtol=1e-5)

    # Case 4: bf16 output (halves write traffic on v6e/v7x).
    out_bf16 = jax.block_until_ready(
        cossin_pallas(x_q, q_ndim, angular_dims, only_q=True,
                      out_dtype=jnp.bfloat16))
    assert out_bf16.dtype == jnp.bfloat16
    assert jnp.allclose(out_bf16.astype(jnp.float32), ref_q,
                        atol=5e-2, rtol=5e-2)

    print("KERNEL_OK")
</pallas_src>

<mosaic_0001>
module attributes {stable_mosaic.version = 11 : i64} {
  func.func @_cossin_kernel(%arg0: i32, %arg1: memref<12x16xf32, #tpu.memory_space<vmem>>, %arg2: memref<15x16xf32, #tpu.memory_space<vmem>>) attributes {dimension_semantics = [#tpu.dimension_semantics<parallel>], iteration_bounds = array<i64: 1>, scalar_prefetch = 0 : i64, scratch_operands = 0 : i64, tpu.core_type = #tpu.core_type<tc>, window_params = [{transform_indices = @transform_0, window_bounds = array<i64: 12, 16>}, {transform_indices = @transform_1, window_bounds = array<i64: 15, 16>}]} {
    %c0 = arith.constant 0 : index
    %c0_0 = arith.constant 0 : index
    %0 = vector.load %arg1[%c0, %c0_0] : memref<12x16xf32, #tpu.memory_space<vmem>>, vector<12x16xf32>
    %1 = vector.extract_strided_slice %0 {offsets = [0, 0], sizes = [6, 16], strides = [1, 1]} : vector<12x16xf32> to vector<6x16xf32>
    %2 = vector.extract_strided_slice %1 {offsets = [1, 0], sizes = [4, 16], strides = [1, 1]} : vector<6x16xf32> to vector<4x16xf32>
    %3 = math.cos %2 : vector<4x16xf32>
    %4 = math.sin %2 : vector<4x16xf32>
    %5 = vector.extract_strided_slice %3 {offsets = [0, 0], sizes = [1, 16], strides = [1, 1]} : vector<4x16xf32> to vector<1x16xf32>
    %6 = vector.extract_strided_slice %3 {offsets = [2, 0], sizes = [2, 16], strides = [1, 1]} : vector<4x16xf32> to vector<2x16xf32>
    %7 = vector.extract_strided_slice %4 {offsets = [0, 0], sizes = [1, 16], strides = [1, 1]} : vector<4x16xf32> to vector<1x16xf32>
    %8 = vector.extract_strided_slice %4 {offsets = [2, 0], sizes = [2, 16], strides = [1, 1]} : vector<4x16xf32> to vector<2x16xf32>
    %9 = vector.extract_strided_slice %1 {offsets = [0, 0], sizes = [1, 16], strides = [1, 1]} : vector<6x16xf32> to vector<1x16xf32>
    %10 = vector.extract_strided_slice %1 {offsets = [2, 0], sizes = [1, 16], strides = [1, 1]} : vector<6x16xf32> to vector<1x16xf32>
    %11 = vector.extract_strided_slice %1 {offsets = [5, 0], sizes = [1, 16], strides = [1, 1]} : vector<6x16xf32> to vector<1x16xf32>
    %12 = vector.extract_strided_slice %0 {offsets = [6, 0], sizes = [6, 16], strides = [1, 1]} : vector<12x16xf32> to vector<6x16xf32>
    %13 = tpu.concatenate %5, %6, %7, %8, %9, %10, %11, %12 in 0 : vector<1x16xf32>, vector<2x16xf32>, vector<1x16xf32>, vector<2x16xf32>, vector<1x16xf32>, vector<1x16xf32>, vector<1x16xf32>, vector<6x16xf32> -> vector<15x16xf32>
    %c0_1 = arith.constant 0 : index
    %c0_2 = arith.constant 0 : index
    %14 = vector.load %arg2[%c0_1, %c0_2] : memref<15x16xf32, #tpu.memory_space<vmem>>, vector<15x16xf32>
    tpu.vector_store %arg2[%c0_1, %c0_2], %13 {strides = array<i32>} : memref<15x16xf32, #tpu.memory_space<vmem>>, vector<15x16xf32>,
    return
  }
  func.func @transform_0(%arg0: i32) -> (i32, i32) {
    %c0_i32 = arith.constant 0 : i32
    %c0_i32_0 = arith.constant 0 : i32
    return %c0_i32, %arg0 : i32, i32
  }
  func.func @transform_1(%arg0: i32) -> (i32, i32) {
    %c0_i32 = arith.constant 0 : i32
    %c0_i32_0 = arith.constant 0 : i32
    return %c0_i32, %arg0 : i32, i32
  }
}

</mosaic_0001>

<llo_original>
// kernel: tpu_custom_call.1
$region0: #{tpu_custom_call.1}
  #allocation0 [shape = 'u32[]', space=smem, size = 0x4, offset = 0x4, fixed_abs, tag = 'smem constant byte address 0x4 - core index']
  #allocation1 [shape = 'u32[144,128]{1,0:T(1,128)}', space=vmem, size = 0x12000, scoped, tag = 'internal scratch']
  %s0 = inlined_call_operand.hbm [shape: f32[12,16], index: 0, kind: input, shape index: {}]
  %s1 = inlined_call_operand.hbm [shape: f32[15,16], index: 1, kind: output, shape index: {}]
  %s2 = sld [smem:[#allocation0]]
  $region18: #{tpu_custom_call.1} parent=0
    _
  %s4 = ssub.s32 1, %s2
  %s5 = scalar_select 0, %s4, %s2
  $region1: #{tpu_custom_call.1} parent=0
    #allocation2 [shape = 'u8[8192]{0}', space=vmem, size = 0x2000, scoped, tag = 'input window, operand 0, single buffered']
    #allocation3 [shape = 's32[1]{0}', space=sflag, size = 0x4, scoped, tag = 'scoped memory for tpu_custom_call.1']
    #allocation4 [shape = 's32[1]{0}', space=sflag, size = 0x4, scoped, tag = 'scoped memory for tpu_custom_call.1']
    #allocation5 [shape = 'u8[8192]{0}', space=vmem, size = 0x2000, scoped, tag = 'output window, operand 0, single buffered']
    %6 = vsyncpa [#allocation3], 0
    %7 = vsyncpa [#allocation4], 0
    // Predicated region
    $region2: #{tpu_custom_call.1} parent=1 // pred_check
      _
    $region3: #{tpu_custom_call.1} parent=1 // pred_check_branch
      %9 = sbr.rel (0) target = $region5
    $region4: #{tpu_custom_call.1} parent=1 // pred_region
      %s11 = ssub.s32 256, 256
      %12 = vsyncadd [#allocation3], %s11
      %s13 = sshll.u32 [#allocation2], 4
      %s14 = int_to_ptr.vmem [resolvable:$true] %s13
      %19 = dma.hbm_to_vmem [thread:$0]  %s0, 256, %s14, [#allocation3], 128, 128, 8
    $region5: #{tpu_custom_call.1} parent=1 // pred_fallthru
      _
    // Predicated region
    $region6: #{tpu_custom_call.1} parent=1 // pred_check
      _
    $region7: #{tpu_custom_call.1} parent=1 // pred_check_branch
      %21 = sbr.rel (0) target = $region9
    $region8: #{tpu_custom_call.1} parent=1 // pred_region
      %22 = dma.done [#allocation3], 256
    $region9: #{tpu_custom_call.1} parent=1 // pred_fallthru
      _
    %v23 = vld [vmem:[#allocation2] sm:$0xff]
    %v24 = vld [vmem:[#allocation2 + $0x8] sm:$0xf]
    %v25 = vand.u32 2147483647, %v23
    %vm26 = vcmp.le.f32.partialorder %v25, 0.7853982
    %vm27 = vcmp.lt.s32.totalorder %v23, 0
    %v28 = vand.u32 %v23, 2139095040
    %v29 = vshrl.u32 %v28, 23
    %v30 = vsub.s32 %v29, 127
    %v31 = vand.u32 2147483647, %v23
    %v32 = vand.u32 %v31, 8388607
    %v33 = vor.u32 %v32, 8388608
    %v34 = vsub.s32 0, %v33
    %v35 = vadd.s32 %v30, 1
    %vm36 = vcmp.gt.s32.totalorder %v35, 0
    %v37 = vsel %vm36, %v35, 0
    %v38 = vshrl.u32 %v37, 5
    %v39 = vand.u32 %v37, 31
    %v40 = vsub.s32 32, %v39
    %v41 = vshrl.u32 683565275, %v40
    %v42 = vshll.u32 683565275, %v39
    %v43 = vshrl.u32 2475754826, %v40
    %v44 = vor.u32 %v42, %v43
    %v45 = vshll.u32 2475754826, %v39
    %v46 = vshrl.u32 2131351028, %v40
    %v47 = vor.u32 %v45, %v46
    %v48 = vshll.u32 2131351028, %v39
    %v49 = vshrl.u32 2102212464, %v40
    %v50 = vor.u32 %v48, %v49
    %v51 = vshll.u32 2102212464, %v39
    %v52 = vshrl.u32 920167782, %v40
    %v53 = vor.u32 %v51, %v52
    %v54 = vshll.u32 920167782, %v39
    %v55 = vshrl.u32 1326507024, %v40
    %v56 = vor.u32 %v54, %v55
    %vm57 = vcmp.lt.s32.totalorder %v38, 1
    %vm58 = vcmp.lt.s32.totalorder %v38, 2
    %vm59 = vcmp.lt.s32.totalorder %v38, 3
    %vm60 = vcmp.lt.s32.totalorder %v38, 4
    %v61 = vsel %vm57, %v41, %v44
    %v62 = vsel %vm60, %v50, 2102212464
    %v63 = vsel %vm59, %v47, %v62
    %v64 = vsel %vm58, %v61, %v63
    %v65 = vsel %vm57, %v44, %v47
    %v66 = vsel %vm60, %v53, 920167782
    %v67 = vsel %vm59, %v50, %v66
    %v68 = vsel %vm58, %v65, %v67
    %v69 = vsel %vm57, %v47, %v50
    %v70 = vsel %vm60, %v56, 1326507024
    %v71 = vsel %vm59, %v53, %v70
    %v72 = vsel %vm58, %v69, %v71
    %v73 = vshll.u32 %v33, 8
    %v74 = vmul.u32.u64.compose %v73, %v72
    %v75 = vextract.low.u32 %v74
    %v76 = vextract.high.u32 %v74
    %v77 = vmul.u32.u64.compose %v73, %v68
    %v78 = vextract.low.u32 %v77
    %v79 = vextract.high.u32 %v77
    %v80 = vmul.u32 %v73, %v64
    %v81 = vadd.s32 %v76, %v78
    %vm82 = vc.u32 %v76, %v78
    %v83 = vadd.s32 %v79, 1
    %v84 = vsel %vm82, %v83, %v79
    %v85 = vadd.s32 %v80, %v84
    %v86 = vadd.s32 %v85, 536870912
    %v87 = vshrl.u32 %v86, 30
    %v88 = vshll.u32 %v87, 30
    %v89 = vsub.s32 %v85, %v88
    %vm90 = vcmp.lt.s32.totalorder %v89, 0
    %v91 = vsub.s32 0, %v89
    %v92 = vsel %vm90, %v91, %v89
    %v93 = vclz %v92
    %v94 = vsub.s32 %v93, 2
    %vm95 = vcmp.gt.s32.totalorder 0, %v94
    %v96 = vsel %vm95, 0, %v94
    %v97 = vsub.s32 32, %v96
    %v98 = vshll.u32 %v89, %v96
    %v99 = vshrl.u32 %v81, %v97
    %v100 = vor.u32 %v98, %v99
    %v101 = vsub.s32 4294967266, %v96
    %v102 = vadd.s32 %v101, 127
    %v103 = vshll.u32 %v102, 23
    %v104 = vor.u32 4788187, %v103
    %v105 = vand.u32 2147483647, %v104
    %v107 = vcvt.s32.f32 %v100
    %v108 = vmul.f32 %v107, %v105
    %v109 = vxor.u32 %v108, 2147483648
    %v110 = vsel %vm27, %v109, %v108
    %v111 = vsub.s32 4, %v87
    %v112 = vsel %vm27, %v111, %v87
    %v113 = vsel %vm26, %v23, %v110
    %v114 = vsel %vm26, 0, %v112
    %v115 = vcosq.f32.pop %v113
    %v116 = vsinq.f32.pop %v113
    %vm117 = vweird.f32 %v23
    %v118 = vand.u32 %v114, 3
    %vm119 = vcmp.lt.s32.totalorder %v118, 2
    %vm120 = vcmp.eq.s32.totalorder %v118, 0
    %v121 = vxor.u32 %v116, 2147483648
    %v122 = vsel %vm120, %v115, %v121
    %vm123 = vcmp.eq.s32.totalorder %v118, 2
    %v124 = vxor.u32 %v115, 2147483648
    %v125 = vsel %vm123, %v124, %v116
    %v126 = vsel %vm119, %v122, %v125
    %v127 = vsel %vm117, nan, %v126
    %v128 = vand.u32 2147483647, %v23
    %vm129 = vcmp.le.f32.partialorder %v128, 0.7853982
    %vm130 = vcmp.lt.s32.totalorder %v23, 0
    %v131 = vand.u32 %v23, 2139095040
    %v132 = vshrl.u32 %v131, 23
    %v133 = vsub.s32 %v132, 127
    %v134 = vand.u32 2147483647, %v23
    %v135 = vand.u32 %v134, 8388607
    %v136 = vor.u32 %v135, 8388608
    %v137 = vsub.s32 0, %v136
    %v138 = vadd.s32 %v133, 1
    %vm139 = vcmp.gt.s32.totalorder %v138, 0
    %v140 = vsel %vm139, %v138, 0
    %v141 = vshrl.u32 %v140, 5
    %v142 = vand.u32 %v140, 31
    %v143 = vsub.s32 32, %v142
    %v144 = vshrl.u32 683565275, %v143
    %v145 = vshll.u32 683565275, %v142
    %v146 = vshrl.u32 2475754826, %v143
    %v147 = vor.u32 %v145, %v146
    %v148 = vshll.u32 2475754826, %v142
    %v149 = vshrl.u32 2131351028, %v143
    %v150 = vor.u32 %v148, %v149
    %v151 = vshll.u32 2131351028, %v142
    %v152 = vshrl.u32 2102212464, %v143
    %v153 = vor.u32 %v151, %v152
    %v154 = vshll.u32 2102212464, %v142
    %v155 = vshrl.u32 920167782, %v143
    %v156 = vor.u32 %v154, %v155
    %v157 = vshll.u32 920167782, %v142
    %v158 = vshrl.u32 1326507024, %v143
    %v159 = vor.u32 %v157, %v158
    %vm160 = vcmp.lt.s32.totalorder %v141, 1
    %vm161 = vcmp.lt.s32.totalorder %v141, 2
    %vm162 = vcmp.lt.s32.totalorder %v141, 3
    %vm163 = vcmp.lt.s32.totalorder %v141, 4
    %v164 = vsel %vm160, %v144, %v147
    %v165 = vsel %vm163, %v153, 2102212464
    %v166 = vsel %vm162, %v150, %v165
    %v167 = vsel %vm161, %v164, %v166
    %v168 = vsel %vm160, %v147, %v150
    %v169 = vsel %vm163, %v156, 920167782
    %v170 = vsel %vm162, %v153, %v169
    %v171 = vsel %vm161, %v168, %v170
    %v172 = vsel %vm160, %v150, %v153
    %v173 = vsel %vm163, %v159, 1326507024
    %v174 = vsel %vm162, %v156, %v173
    %v175 = vsel %vm161, %v172, %v174
    %v176 = vshll.u32 %v136, 8
    %v177 = vmul.u32.u64.compose %v176, %v175
    %v178 = vextract.low.u32 %v177
    %v179 = vextract.high.u32 %v177
    %v180 = vmul.u32.u64.compose %v176, %v171
    %v181 = vextract.low.u32 %v180
    %v182 = vextract.high.u32 %v180
    %v183 = vmul.u32 %v176, %v167
    %v184 = vadd.s32 %v179, %v181
    %vm185 = vc.u32 %v179, %v181
    %v186 = vadd.s32 %v182, 1
    %v187 = vsel %vm185, %v186, %v182
    %v188 = vadd.s32 %v183, %v187
    %v189 = vadd.s32 %v188, 536870912
    %v190 = vshrl.u32 %v189, 30
    %v191 = vshll.u32 %v190, 30
    %v192 = vsub.s32 %v188, %v191
    %vm193 = vcmp.lt.s32.totalorder %v192, 0
    %v194 = vsub.s32 0, %v192
    %v195 = vsel %vm193, %v194, %v192
    %v196 = vclz %v195
    %v197 = vsub.s32 %v196, 2
    %vm198 = vcmp.gt.s32.totalorder 0, %v197
    %v199 = vsel %vm198, 0, %v197
    %v200 = vsub.s32 32, %v199
    %v201 = vshll.u32 %v192, %v199
    %v202 = vshrl.u32 %v184, %v200
    %v203 = vor.u32 %v201, %v202
    %v204 = vsub.s32 4294967266, %v199
    %v205 = vadd.s32 %v204, 127
    %v206 = vshll.u32 %v205, 23
    %v207 = vor.u32 4788187, %v206
    %v208 = vand.u32 2147483647, %v207
    %v210 = vcvt.s32.f32 %v203
    %v211 = vmul.f32 %v210, %v208
    %v212 = vxor.u32 %v211, 2147483648
    %v213 = vsel %vm130, %v212, %v211
    %v214 = vsub.s32 4, %v190
    %v215 = vsel %vm130, %v214, %v190
    %v216 = vsel %vm129, %v23, %v213
    %v217 = vsel %vm129, 0, %v215
    %v218 = vcosq.f32.pop %v216
    %v219 = vsinq.f32.pop %v216
    %vm220 = vweird.f32 %v23
    %v221 = vadd.s32 %v217, 3
    %v222 = vand.u32 %v221, 3
    %vm223 = vcmp.lt.s32.totalorder %v222, 2
    %vm224 = vcmp.eq.s32.totalorder %v222, 0
    %v225 = vxor.u32 %v219, 2147483648
    %v226 = vsel %vm224, %v218, %v225
    %vm227 = vcmp.eq.s32.totalorder %v222, 2
    %v228 = vxor.u32 %v218, 2147483648
    %v229 = vsel %vm227, %v228, %v219
    %v230 = vsel %vm223, %v226, %v229
    %v231 = vsel %vm220, nan, %v230
    %v233 = vrot.slane %v127, 1
    %v235 = vrot.slane %v127, 2
    %v238 = vrot.slane %v231, 6
    %v240 = vrot.slane %v231, 7
    %v243 = vrot.slane %v23, 2
    %v245 = vrot.slane %v23, 3
    %v247 = vrot.slane %v23, 5
    %vm250 = vcmask 1042432
    %v251 = vrot.slane %v24, 5
    %v252 = vsel %vm250, %v247, %v251
    %vm254 = vcmask 1040384
    %v255 = vsel %vm254, %v233, %v235
    %v256 = vsel %vm250, %v255, %v238
    %vm257 = vcmask 1043456
    %v258 = vsel %vm257, %v256, %v240
    %vm259 = vcmask 1045504
    %v260 = vsel %vm259, %v258, %v243
    %vm261 = vcmask 1046528
    %v262 = vsel %vm261, %v260, %v245
    %v263 = vsel %vm254, %v247, %v252
    %vm264 = vcmask 130048
    %265 = vst.msk [vmem:[#allocation5] sm:$0xff] %vm264, %v262
    %vm266 = vcmask 129024
    %267 = vst.msk [vmem:[#allocation5 + $0x8] sm:$0x7f] %vm266, %v263
    // Predicated region
    $region10: #{tpu_custom_call.1} parent=1 // pred_check
      _
    $region11: #{tpu_custom_call.1} parent=1 // pred_check_branch
      %269 = sbr.rel (0) target = $region13
    $region12: #{tpu_custom_call.1} parent=1 // pred_region
      %s271 = ssub.s32 256, 256
      %272 = vsyncadd [#allocation4], %s271
      %s273 = sshll.u32 [#allocation5], 4
      %s274 = int_to_ptr.vmem [resolvable:$true] %s273
      %279 = dma.vmem_to_hbm [thread:$0]  %s274, 256, %s1, [#allocation4], 128, 128, 8
    $region13: #{tpu_custom_call.1} parent=1 // pred_fallthru
      _
    // Predicated region
    $region14: #{tpu_custom_call.1} parent=1 // pred_check
      _
    $region15: #{tpu_custom_call.1} parent=1 // pred_check_branch
      %281 = sbr.rel (0) target = $region17
    $region16: #{tpu_custom_call.1} parent=1 // pred_region
      %282 = dma.done [#allocation4], 256
    $region17: #{tpu_custom_call.1} parent=1 // pred_fallthru
      _
    %283 = vsyncpa [#allocation3], 1
    %284 = vsyncpa [#allocation4], 1

</llo_original>
